<compile_context>
chip_gen: v6e
topology: v6e:2x2x1
jax: 0.10.0
libtpu: 0.0.40
codegen_flags: <defaults>
</compile_context>

<pallas_src>
import functools

import jax
import jax.numpy as jnp
from jax.experimental import pallas as pl
from jax.experimental.pallas import tpu as pltpu

HIDDEN = 256          # per-head hidden width (matches the PyTorch module)
Q_LANES = 128         # lane-dense output width (q1 -> lane 0, q2 -> lane 1)


def _critic_kernel(sa_ref, w14_ref, b14_ref, w2_ref, b2_ref, w5_ref, b5_ref,
                   w3p_ref, w6p_ref, b36_ref, out_ref, *, compute_dtype):
    # Layer 1 (both heads fused): [TM, IN_PAD] @ [IN_PAD, 512]
    sa = sa_ref[...].astype(compute_dtype)
    h = jnp.dot(sa, w14_ref[...], preferred_element_type=jnp.float32)
    h = jnp.maximum(h + b14_ref[...], 0.0)          # f32 bias + ReLU (VPU)

    # Split fused activations on a lane-aligned boundary (256 = 2*128).
    h1 = h[:, :HIDDEN].astype(compute_dtype)        # Q1 head
    h2 = h[:, HIDDEN:].astype(compute_dtype)        # Q2 head

    # Layer 2 per head: [TM, 256] @ [256, 256]
    g1 = jnp.maximum(
        jnp.dot(h1, w2_ref[...], preferred_element_type=jnp.float32) + b2_ref[...], 0.0)
    g2 = jnp.maximum(
        jnp.dot(h2, w5_ref[...], preferred_element_type=jnp.float32) + b5_ref[...], 0.0)

    # Layer 3, fused & lane-dense: w3 lives in lane 0 of w3p, w6 in lane 1 of
    # w6p, so the sum lands q1/q2 in adjacent lanes of one unmasked store.
    q = (jnp.dot(g1.astype(compute_dtype), w3p_ref[...],
                 preferred_element_type=jnp.float32)
         + jnp.dot(g2.astype(compute_dtype), w6p_ref[...],
                   preferred_element_type=jnp.float32)
         + b36_ref[...])
    out_ref[...] = q


def critic_forward(state, discrete_action, parameter_action, params,
                   *, compute_dtype=jnp.float32, tile_m=256):
    """Equivalent of Critic.forward. Returns (q1, q2), each [B, 1] float32."""
    B = state.shape[0]
    sd = state.shape[1]
    dd = discrete_action.shape[1]
    pd = parameter_action.shape[1]
    in_dim = sd + dd + pd
    in_pad = 128 * pl.cdiv(in_dim, 128)

    # Batch tile: multiple of 8, at most `tile_m`, batch padded up to a multiple.
    tm = int(min(tile_m, 8 * pl.cdiv(B, 8)))
    tm = max(tm, 8)
    b_pad = tm * pl.cdiv(B, tm)

    # Build the zero-padded, concatenated (B_pad, IN_PAD) input directly
    # (avoids a separate non-128-aligned concat operand).
    sa_p = jnp.zeros((b_pad, in_pad), jnp.float32)
    sa_p = sa_p.at[:B, :sd].set(state.astype(jnp.float32))
    sa_p = sa_p.at[:B, sd:sd + dd].set(discrete_action.astype(jnp.float32))
    sa_p = sa_p.at[:B, sd + dd:in_dim].set(parameter_action.astype(jnp.float32))

    # ---- fused / padded weights (cheap JAX glue, runs once per call) ----
    w14 = jnp.zeros((in_pad, 2 * HIDDEN), jnp.float32)
    w14 = w14.at[:in_dim, :HIDDEN].set(params["w1"])
    w14 = w14.at[:in_dim, HIDDEN:].set(params["w4"])
    b14 = jnp.concatenate([params["b1"], params["b4"]], axis=1)       # (1, 512)

    w2, b2 = params["w2"], params["b2"]                                # (256,256),(1,256)
    w5, b5 = params["w5"], params["b5"]

    w3p = jnp.zeros((HIDDEN, Q_LANES), jnp.float32).at[:, 0:1].set(params["w3"])
    w6p = jnp.zeros((HIDDEN, Q_LANES), jnp.float32).at[:, 1:2].set(params["w6"])
    b36 = (jnp.zeros((1, Q_LANES), jnp.float32)
           .at[0, 0].set(params["b3"][0, 0])
           .at[0, 1].set(params["b6"][0, 0]))

    # Pre-cast matmul weights (bf16 on v6e/v7x); biases stay f32 for the VPU adds.
    w14c = w14.astype(compute_dtype)
    w2c = w2.astype(compute_dtype)
    w5c = w5.astype(compute_dtype)
    w3pc = w3p.astype(compute_dtype)
    w6pc = w6p.astype(compute_dtype)

    grid = (b_pad // tm,)

    def _const(shape):  # weights/biases: resident in VMEM across the batch grid
        return pl.BlockSpec(shape, lambda i: (0, 0))

    flops = 2 * b_pad * (in_pad * 2 * HIDDEN + 2 * HIDDEN * HIDDEN
                         + 2 * HIDDEN * Q_LANES)
    bytes_accessed = 4 * (b_pad * in_pad + b_pad * Q_LANES) + 4 * (
        in_pad * 2 * HIDDEN + 2 * HIDDEN + 2 * HIDDEN * HIDDEN + 2 * HIDDEN
        + 2 * HIDDEN * Q_LANES + Q_LANES)

    out = pl.pallas_call(
        functools.partial(_critic_kernel, compute_dtype=compute_dtype),
        out_shape=jax.ShapeDtypeStruct((b_pad, Q_LANES), jnp.float32),
        grid=grid,
        in_specs=[
            pl.BlockSpec((tm, in_pad), lambda i: (i, 0)),   # sa tile (streamed)
            _const((in_pad, 2 * HIDDEN)),                   # W1||W4
            _const((1, 2 * HIDDEN)),                        # b1||b4
            _const((HIDDEN, HIDDEN)),                       # W2
            _const((1, HIDDEN)),                            # b2
            _const((HIDDEN, HIDDEN)),                       # W5
            _const((1, HIDDEN)),                            # b5
            _const((HIDDEN, Q_LANES)),                      # W3 padded to 128 lanes
            _const((HIDDEN, Q_LANES)),                      # W6 padded to 128 lanes
            _const((1, Q_LANES)),                           # b3/b6 folded
        ],
        out_specs=pl.BlockSpec((tm, Q_LANES), lambda i: (i, 0)),
        compiler_params=pltpu.CompilerParams(
            dimension_semantics=("parallel",)),
        cost_estimate=pl.CostEstimate(
            flops=flops, transcendentals=0, bytes_accessed=bytes_accessed),
    )(sa_p, w14c, b14, w2c, b2, w5c, b5, w3pc, w6pc, b36)

    q1 = out[:B, 0:1]
    q2 = out[:B, 1:2]
    return q1, q2


def init_critic_params(key, state_dim, discrete_action_dim, parameter_action_dim,
                       hidden_dim=HIDDEN):
    """Deterministic synthetic init (torch Linear shapes, stored transposed)."""
    in_dim = state_dim + discrete_action_dim + parameter_action_dim
    dims = {
        1: (in_dim, hidden_dim), 2: (hidden_dim, hidden_dim), 3: (hidden_dim, 1),
        4: (in_dim, hidden_dim), 5: (hidden_dim, hidden_dim), 6: (hidden_dim, 1),
    }
    params = {}
    for i, (fan_in, fan_out) in dims.items():
        key, kw, kb = jax.random.split(key, 3)
        bound = 1.0 / jnp.sqrt(fan_in)
        # torch weight is [out, in]; we store [in, out] for x @ W.
        params[f"w{i}"] = jax.random.uniform(
            kw, (fan_in, fan_out), jnp.float32, -bound, bound)
        params[f"b{i}"] = jax.random.uniform(
            kb, (1, fan_out), jnp.float32, -bound, bound)
    return params


def _reference_forward(state, discrete_action, parameter_action, params):
    sa = jnp.concatenate([state, discrete_action, parameter_action], axis=1)
    h = jax.nn.relu(sa @ params["w1"] + params["b1"])
    h = jax.nn.relu(h @ params["w2"] + params["b2"])
    q1 = h @ params["w3"] + params["b3"]
    g = jax.nn.relu(sa @ params["w4"] + params["b4"])
    g = jax.nn.relu(g @ params["w5"] + params["b5"])
    q2 = g @ params["w6"] + params["b6"]
    return q1, q2


if __name__ == "__main__":
    state_dim, discrete_action_dim, parameter_action_dim = 16, 4, 8
    batch = 8

    key = jax.random.PRNGKey(0)
    kp, ks, kd, ka = jax.random.split(key, 4)

    params = init_critic_params(kp, state_dim, discrete_action_dim,
                                parameter_action_dim)

    state = jax.random.normal(ks, (batch, state_dim), jnp.float32)
    discrete_action = jax.random.normal(kd, (batch, discrete_action_dim), jnp.float32)
    parameter_action = jax.random.normal(ka, (batch, parameter_action_dim), jnp.float32)

    r1, r2 = _reference_forward(state, discrete_action, parameter_action, params)

    # f32 compute path (default; v5e-friendly).
    fwd_f32 = jax.jit(functools.partial(critic_forward, compute_dtype=jnp.float32))
    q1, q2 = fwd_f32(state, discrete_action, parameter_action, params)
    jax.block_until_ready((q1, q2))
    assert q1.shape == (batch, 1) and q2.shape == (batch, 1)
    assert jnp.allclose(q1, r1, atol=5e-3, rtol=5e-3)
    assert jnp.allclose(q2, r2, atol=5e-3, rtol=5e-3)

    # bf16 MXU-input path (v6e/v7x throughput); f32 accumulation retained,
    # validated with a looser tolerance as recommended.
    fwd_bf16 = jax.jit(functools.partial(critic_forward, compute_dtype=jnp.bfloat16))
    q1b, q2b = fwd_bf16(state, discrete_action, parameter_action, params)
    jax.block_until_ready((q1b, q2b))
    assert jnp.allclose(q1b, r1, atol=5e-2, rtol=5e-2)
    assert jnp.allclose(q2b, r2, atol=5e-2, rtol=5e-2)

    print("KERNEL_OK")
</pallas_src>

<mosaic_0001>
module attributes {stable_mosaic.version = 11 : i64} {
  func.func @_critic_kernel(%arg0: i32, %arg1: memref<8x128xf32, #tpu.memory_space<vmem>>, %arg2: memref<128x512xf32, #tpu.memory_space<vmem>>, %arg3: memref<1x512xf32, #tpu.memory_space<vmem>>, %arg4: memref<256x256xf32, #tpu.memory_space<vmem>>, %arg5: memref<1x256xf32, #tpu.memory_space<vmem>>, %arg6: memref<256x256xf32, #tpu.memory_space<vmem>>, %arg7: memref<1x256xf32, #tpu.memory_space<vmem>>, %arg8: memref<256x128xf32, #tpu.memory_space<vmem>>, %arg9: memref<256x128xf32, #tpu.memory_space<vmem>>, %arg10: memref<1x128xf32, #tpu.memory_space<vmem>>, %arg11: memref<8x128xf32, #tpu.memory_space<vmem>>) attributes {dimension_semantics = [#tpu.dimension_semantics<parallel>], iteration_bounds = array<i64: 1>, scalar_prefetch = 0 : i64, scratch_operands = 0 : i64, tpu.core_type = #tpu.core_type<tc>, window_params = [{transform_indices = @transform_0, window_bounds = array<i64: 8, 128>}, {pipeline_mode = #tpu.pipeline_mode<synchronous>, transform_indices = @transform_1, window_bounds = array<i64: 128, 512>}, {pipeline_mode = #tpu.pipeline_mode<synchronous>, transform_indices = @transform_2, window_bounds = array<i64: 1, 512>}, {pipeline_mode = #tpu.pipeline_mode<synchronous>, transform_indices = @transform_3, window_bounds = array<i64: 256, 256>}, {pipeline_mode = #tpu.pipeline_mode<synchronous>, transform_indices = @transform_4, window_bounds = array<i64: 1, 256>}, {pipeline_mode = #tpu.pipeline_mode<synchronous>, transform_indices = @transform_5, window_bounds = array<i64: 256, 256>}, {pipeline_mode = #tpu.pipeline_mode<synchronous>, transform_indices = @transform_6, window_bounds = array<i64: 1, 256>}, {pipeline_mode = #tpu.pipeline_mode<synchronous>, transform_indices = @transform_7, window_bounds = array<i64: 256, 128>}, {pipeline_mode = #tpu.pipeline_mode<synchronous>, transform_indices = @transform_8, window_bounds = array<i64: 256, 128>}, {pipeline_mode = #tpu.pipeline_mode<synchronous>, transform_indices = @transform_9, window_bounds = array<i64: 1, 128>}, {transform_indices = @transform_10, window_bounds = array<i64: 8, 128>}]} {
    %c0 = arith.constant 0 : index
    %c0_0 = arith.constant 0 : index
    %0 = vector.load %arg1[%c0, %c0_0] : memref<8x128xf32, #tpu.memory_space<vmem>>, vector<8x128xf32>
    %c0_1 = arith.constant 0 : index
    %c0_2 = arith.constant 0 : index
    %1 = vector.load %arg2[%c0_1, %c0_2] : memref<128x512xf32, #tpu.memory_space<vmem>>, vector<128x512xf32>
    %cst = arith.constant dense<0.000000e+00> : vector<8x512xf32>
    %2 = tpu.matmul %0, %1, %cst {dimension_numbers = #tpu.dot_dimension_numbers<[1], [0], [0], [1], [0, 0, 1, 1], [], []>} : vector<8x128xf32>, vector<128x512xf32>, vector<8x512xf32> -> vector<8x512xf32>
    %c0_3 = arith.constant 0 : index
    %c0_4 = arith.constant 0 : index
    %3 = vector.load %arg3[%c0_3, %c0_4] : memref<1x512xf32, #tpu.memory_space<vmem>>, vector<1x512xf32>
    %4 = vector.broadcast %3 : vector<1x512xf32> to vector<8x512xf32>
    %5 = arith.addf %2, %4 : vector<8x512xf32>
    %cst_5 = arith.constant 0.000000e+00 : f32
    %6 = vector.broadcast %cst_5 : f32 to vector<8x512xf32>
    %7 = arith.maximumf %5, %6 : vector<8x512xf32>
    %8 = vector.extract_strided_slice %7 {offsets = [0, 0], sizes = [8, 256], strides = [1, 1]} : vector<8x512xf32> to vector<8x256xf32>
    %9 = vector.extract_strided_slice %7 {offsets = [0, 256], sizes = [8, 256], strides = [1, 1]} : vector<8x512xf32> to vector<8x256xf32>
    %c0_6 = arith.constant 0 : index
    %c0_7 = arith.constant 0 : index
    %10 = vector.load %arg4[%c0_6, %c0_7] : memref<256x256xf32, #tpu.memory_space<vmem>>, vector<256x256xf32>
    %cst_8 = arith.constant dense<0.000000e+00> : vector<8x256xf32>
    %11 = tpu.matmul %8, %10, %cst_8 {dimension_numbers = #tpu.dot_dimension_numbers<[1], [0], [0], [1], [0, 0, 1, 1], [], []>} : vector<8x256xf32>, vector<256x256xf32>, vector<8x256xf32> -> vector<8x256xf32>
    %c0_9 = arith.constant 0 : index
    %c0_10 = arith.constant 0 : index
    %12 = vector.load %arg5[%c0_9, %c0_10] : memref<1x256xf32, #tpu.memory_space<vmem>>, vector<1x256xf32>
    %13 = vector.broadcast %12 : vector<1x256xf32> to vector<8x256xf32>
    %14 = arith.addf %11, %13 : vector<8x256xf32>
    %cst_11 = arith.constant 0.000000e+00 : f32
    %15 = vector.broadcast %cst_11 : f32 to vector<8x256xf32>
    %16 = arith.maximumf %14, %15 : vector<8x256xf32>
    %c0_12 = arith.constant 0 : index
    %c0_13 = arith.constant 0 : index
    %17 = vector.load %arg6[%c0_12, %c0_13] : memref<256x256xf32, #tpu.memory_space<vmem>>, vector<256x256xf32>
    %cst_14 = arith.constant dense<0.000000e+00> : vector<8x256xf32>
    %18 = tpu.matmul %9, %17, %cst_14 {dimension_numbers = #tpu.dot_dimension_numbers<[1], [0], [0], [1], [0, 0, 1, 1], [], []>} : vector<8x256xf32>, vector<256x256xf32>, vector<8x256xf32> -> vector<8x256xf32>
    %c0_15 = arith.constant 0 : index
    %c0_16 = arith.constant 0 : index
    %19 = vector.load %arg7[%c0_15, %c0_16] : memref<1x256xf32, #tpu.memory_space<vmem>>, vector<1x256xf32>
    %20 = vector.broadcast %19 : vector<1x256xf32> to vector<8x256xf32>
    %21 = arith.addf %18, %20 : vector<8x256xf32>
    %cst_17 = arith.constant 0.000000e+00 : f32
    %22 = vector.broadcast %cst_17 : f32 to vector<8x256xf32>
    %23 = arith.maximumf %21, %22 : vector<8x256xf32>
    %c0_18 = arith.constant 0 : index
    %c0_19 = arith.constant 0 : index
    %24 = vector.load %arg8[%c0_18, %c0_19] : memref<256x128xf32, #tpu.memory_space<vmem>>, vector<256x128xf32>
    %cst_20 = arith.constant dense<0.000000e+00> : vector<8x128xf32>
    %25 = tpu.matmul %16, %24, %cst_20 {dimension_numbers = #tpu.dot_dimension_numbers<[1], [0], [0], [1], [0, 0, 1, 1], [], []>} : vector<8x256xf32>, vector<256x128xf32>, vector<8x128xf32> -> vector<8x128xf32>
    %c0_21 = arith.constant 0 : index
    %c0_22 = arith.constant 0 : index
    %26 = vector.load %arg9[%c0_21, %c0_22] : memref<256x128xf32, #tpu.memory_space<vmem>>, vector<256x128xf32>
    %cst_23 = arith.constant dense<0.000000e+00> : vector<8x128xf32>
    %27 = tpu.matmul %23, %26, %cst_23 {dimension_numbers = #tpu.dot_dimension_numbers<[1], [0], [0], [1], [0, 0, 1, 1], [], []>} : vector<8x256xf32>, vector<256x128xf32>, vector<8x128xf32> -> vector<8x128xf32>
    %28 = arith.addf %25, %27 : vector<8x128xf32>
    %c0_24 = arith.constant 0 : index
    %c0_25 = arith.constant 0 : index
    %29 = vector.load %arg10[%c0_24, %c0_25] : memref<1x128xf32, #tpu.memory_space<vmem>>, vector<1x128xf32>
    %30 = vector.broadcast %29 : vector<1x128xf32> to vector<8x128xf32>
    %31 = arith.addf %28, %30 : vector<8x128xf32>
    %c0_26 = arith.constant 0 : index
    %c0_27 = arith.constant 0 : index
    %32 = vector.load %arg11[%c0_26, %c0_27] : memref<8x128xf32, #tpu.memory_space<vmem>>, vector<8x128xf32>
    tpu.vector_store %arg11[%c0_26, %c0_27], %31 {strides = array<i32>} : memref<8x128xf32, #tpu.memory_space<vmem>>, vector<8x128xf32>,
    return
  }
  func.func @transform_0(%arg0: i32) -> (i32, i32) {
    %c0_i32 = arith.constant 0 : i32
    %c0_i32_0 = arith.constant 0 : i32
    return %arg0, %c0_i32 : i32, i32
  }
  func.func @transform_1(%arg0: i32) -> (i32, i32) {
    %c0_i32 = arith.constant 0 : i32
    %c0_i32_0 = arith.constant 0 : i32
    %c0_i32_1 = arith.constant 0 : i32
    return %c0_i32, %c0_i32_0 : i32, i32
  }
  func.func @transform_2(%arg0: i32) -> (i32, i32) {
    %c0_i32 = arith.constant 0 : i32
    %c0_i32_0 = arith.constant 0 : i32
    %c0_i32_1 = arith.constant 0 : i32
    return %c0_i32, %c0_i32_0 : i32, i32
  }
  func.func @transform_3(%arg0: i32) -> (i32, i32) {
    %c0_i32 = arith.constant 0 : i32
    %c0_i32_0 = arith.constant 0 : i32
    %c0_i32_1 = arith.constant 0 : i32
    return %c0_i32, %c0_i32_0 : i32, i32
  }
  func.func @transform_4(%arg0: i32) -> (i32, i32) {
    %c0_i32 = arith.constant 0 : i32
    %c0_i32_0 = arith.constant 0 : i32
    %c0_i32_1 = arith.constant 0 : i32
    return %c0_i32, %c0_i32_0 : i32, i32
  }
  func.func @transform_5(%arg0: i32) -> (i32, i32) {
    %c0_i32 = arith.constant 0 : i32
    %c0_i32_0 = arith.constant 0 : i32
    %c0_i32_1 = arith.constant 0 : i32
    return %c0_i32, %c0_i32_0 : i32, i32
  }
  func.func @transform_6(%arg0: i32) -> (i32, i32) {
    %c0_i32 = arith.constant 0 : i32
    %c0_i32_0 = arith.constant 0 : i32
    %c0_i32_1 = arith.constant 0 : i32
    return %c0_i32, %c0_i32_0 : i32, i32
  }
  func.func @transform_7(%arg0: i32) -> (i32, i32) {
    %c0_i32 = arith.constant 0 : i32
    %c0_i32_0 = arith.constant 0 : i32
    %c0_i32_1 = arith.constant 0 : i32
    return %c0_i32, %c0_i32_0 : i32, i32
  }
  func.func @transform_8(%arg0: i32) -> (i32, i32) {
    %c0_i32 = arith.constant 0 : i32
    %c0_i32_0 = arith.constant 0 : i32
    %c0_i32_1 = arith.constant 0 : i32
    return %c0_i32, %c0_i32_0 : i32, i32
  }
  func.func @transform_9(%arg0: i32) -> (i32, i32) {
    %c0_i32 = arith.constant 0 : i32
    %c0_i32_0 = arith.constant 0 : i32
    %c0_i32_1 = arith.constant 0 : i32
    return %c0_i32, %c0_i32_0 : i32, i32
  }
  func.func @transform_10(%arg0: i32) -> (i32, i32) {
    %c0_i32 = arith.constant 0 : i32
    %c0_i32_0 = arith.constant 0 : i32
    return %arg0, %c0_i32 : i32, i32
  }
}

</mosaic_0001>

<llo_original>
// kernel: critic_forward.1
$region0: #{critic_forward.1}
  #allocation0 [shape = 'u32[]', space=smem, size = 0x4, offset = 0x4, fixed_abs, tag = 'smem constant byte address 0x4 - core index']
  #allocation1 [shape = 'u32[144,128]{1,0:T(1,128)}', space=vmem, size = 0x12000, scoped, tag = 'internal scratch']
  %s0 = inlined_call_operand.vmem [shape: f32[8,128], index: 0, kind: input, shape index: {}]
  %s1 = inlined_call_operand.vmem [shape: f32[128,512], index: 1, kind: input, shape index: {}]
  %s2 = inlined_call_operand.vmem [shape: f32[1,512], index: 2, kind: input, shape index: {}]
  %s3 = inlined_call_operand.vmem [shape: f32[256,256], index: 3, kind: input, shape index: {}]
  %s4 = inlined_call_operand.vmem [shape: f32[1,256], index: 4, kind: input, shape index: {}]
  %s5 = inlined_call_operand.vmem [shape: f32[256,256], index: 5, kind: input, shape index: {}]
  %s6 = inlined_call_operand.vmem [shape: f32[1,256], index: 6, kind: input, shape index: {}]
  %s7 = inlined_call_operand.vmem [shape: f32[256,128], index: 7, kind: input, shape index: {}]
  %s8 = inlined_call_operand.vmem [shape: f32[256,128], index: 8, kind: input, shape index: {}]
  %s9 = inlined_call_operand.vmem [shape: f32[1,128], index: 9, kind: input, shape index: {}]
  %s10 = inlined_call_operand.vmem [shape: f32[8,128], index: 10, kind: output, shape index: {}]
  %s11 = sld [smem:[#allocation0]]
  $region50: #{critic_forward.1} parent=0
    _
  %s13 = ssub.s32 1, %s11
  %s14 = scalar_select 0, %s13, %s11
  // Predicated region
  $region2: #{critic_forward.1} parent=0 // pred_check
    _
  $region3: #{critic_forward.1} parent=0 // pred_check_branch
    %16 = sbr.rel (0) target = $region5
  $region4: #{critic_forward.1} parent=0 // pred_region
    _
  $region5: #{critic_forward.1} parent=0 // pred_fallthru
    _
  // Predicated region
  $region6: #{critic_forward.1} parent=0 // pred_check
    _
  $region7: #{critic_forward.1} parent=0 // pred_check_branch
    %18 = sbr.rel (0) target = $region9
  $region8: #{critic_forward.1} parent=0 // pred_region
    _
  $region9: #{critic_forward.1} parent=0 // pred_fallthru
    _
  // Predicated region
  $region10: #{critic_forward.1} parent=0 // pred_check
    _
  $region11: #{critic_forward.1} parent=0 // pred_check_branch
    %20 = sbr.rel (0) target = $region13
  $region12: #{critic_forward.1} parent=0 // pred_region
    _
  $region13: #{critic_forward.1} parent=0 // pred_fallthru
    _
  // Predicated region
  $region14: #{critic_forward.1} parent=0 // pred_check
    _
  $region15: #{critic_forward.1} parent=0 // pred_check_branch
    %22 = sbr.rel (0) target = $region17
  $region16: #{critic_forward.1} parent=0 // pred_region
    _
  $region17: #{critic_forward.1} parent=0 // pred_fallthru
    _
  // Predicated region
  $region18: #{critic_forward.1} parent=0 // pred_check
    _
  $region19: #{critic_forward.1} parent=0 // pred_check_branch
    %24 = sbr.rel (0) target = $region21
  $region20: #{critic_forward.1} parent=0 // pred_region
    _
  $region21: #{critic_forward.1} parent=0 // pred_fallthru
    _
  // Predicated region
  $region22: #{critic_forward.1} parent=0 // pred_check
    _
  $region23: #{critic_forward.1} parent=0 // pred_check_branch
    %26 = sbr.rel (0) target = $region25
  $region24: #{critic_forward.1} parent=0 // pred_region
    _
  $region25: #{critic_forward.1} parent=0 // pred_fallthru
    _
  // Predicated region
  $region26: #{critic_forward.1} parent=0 // pred_check
    _
  $region27: #{critic_forward.1} parent=0 // pred_check_branch
    %28 = sbr.rel (0) target = $region29
  $region28: #{critic_forward.1} parent=0 // pred_region
    _
  $region29: #{critic_forward.1} parent=0 // pred_fallthru
    _
  // Predicated region
  $region30: #{critic_forward.1} parent=0 // pred_check
    _
  $region31: #{critic_forward.1} parent=0 // pred_check_branch
    %30 = sbr.rel (0) target = $region33
  $region32: #{critic_forward.1} parent=0 // pred_region
    _
  $region33: #{critic_forward.1} parent=0 // pred_fallthru
    _
  // Predicated region
  $region34: #{critic_forward.1} parent=0 // pred_check
    _
  $region35: #{critic_forward.1} parent=0 // pred_check_branch
    %32 = sbr.rel (0) target = $region37
  $region36: #{critic_forward.1} parent=0 // pred_region
    _
  $region37: #{critic_forward.1} parent=0 // pred_fallthru
    _
  // Predicated region
  $region38: #{critic_forward.1} parent=0 // pred_check
    _
  $region39: #{critic_forward.1} parent=0 // pred_check_branch
    %34 = sbr.rel (0) target = $region41
  $region40: #{critic_forward.1} parent=0 // pred_region
    _
  $region41: #{critic_forward.1} parent=0 // pred_fallthru
    _
  %v35 = vld [vmem:[%s0] sm:$0xff]
  %v36 = vld [vmem:[%s1] sm:$0xff]
  %v37 = vld [vmem:[%s1 + $0x8] sm:$0xff]
  %v38 = vld [vmem:[%s1 + $0x10] sm:$0xff]
  %v39 = vld [vmem:[%s1 + $0x18] sm:$0xff]
  %v40 = vld [vmem:[%s1 + $0x20] sm:$0xff]
  %v41 = vld [vmem:[%s1 + $0x28] sm:$0xff]
  %v42 = vld [vmem:[%s1 + $0x30] sm:$0xff]
  %v43 = vld [vmem:[%s1 + $0x38] sm:$0xff]
  %v44 = vld [vmem:[%s1 + $0x40] sm:$0xff]
  %v45 = vld [vmem:[%s1 + $0x48] sm:$0xff]
  %v46 = vld [vmem:[%s1 + $0x50] sm:$0xff]
  %v47 = vld [vmem:[%s1 + $0x58] sm:$0xff]
  %v48 = vld [vmem:[%s1 + $0x60] sm:$0xff]
  %v49 = vld [vmem:[%s1 + $0x68] sm:$0xff]
  %v50 = vld [vmem:[%s1 + $0x70] sm:$0xff]
  %v51 = vld [vmem:[%s1 + $0x78] sm:$0xff]
  %v52 = vld [vmem:[%s1 + $0x80] sm:$0xff]
  %v53 = vld [vmem:[%s1 + $0x88] sm:$0xff]
  %v54 = vld [vmem:[%s1 + $0x90] sm:$0xff]
  %v55 = vld [vmem:[%s1 + $0x98] sm:$0xff]
  %v56 = vld [vmem:[%s1 + $0xa0] sm:$0xff]
  %v57 = vld [vmem:[%s1 + $0xa8] sm:$0xff]
  %v58 = vld [vmem:[%s1 + $0xb0] sm:$0xff]
  %v59 = vld [vmem:[%s1 + $0xb8] sm:$0xff]
  %v60 = vld [vmem:[%s1 + $0xc0] sm:$0xff]
  %v61 = vld [vmem:[%s1 + $0xc8] sm:$0xff]
  %v62 = vld [vmem:[%s1 + $0xd0] sm:$0xff]
  %v63 = vld [vmem:[%s1 + $0xd8] sm:$0xff]
  %v64 = vld [vmem:[%s1 + $0xe0] sm:$0xff]
  %v65 = vld [vmem:[%s1 + $0xe8] sm:$0xff]
  %v66 = vld [vmem:[%s1 + $0xf0] sm:$0xff]
  %v67 = vld [vmem:[%s1 + $0xf8] sm:$0xff]
  %v68 = vld [vmem:[%s1 + $0x100] sm:$0xff]
  %v69 = vld [vmem:[%s1 + $0x108] sm:$0xff]
  %v70 = vld [vmem:[%s1 + $0x110] sm:$0xff]
  %v71 = vld [vmem:[%s1 + $0x118] sm:$0xff]
  %v72 = vld [vmem:[%s1 + $0x120] sm:$0xff]
  %v73 = vld [vmem:[%s1 + $0x128] sm:$0xff]
  %v74 = vld [vmem:[%s1 + $0x130] sm:$0xff]
  %v75 = vld [vmem:[%s1 + $0x138] sm:$0xff]
  %v76 = vld [vmem:[%s1 + $0x140] sm:$0xff]
  %v77 = vld [vmem:[%s1 + $0x148] sm:$0xff]
  %v78 = vld [vmem:[%s1 + $0x150] sm:$0xff]
  %v79 = vld [vmem:[%s1 + $0x158] sm:$0xff]
  %v80 = vld [vmem:[%s1 + $0x160] sm:$0xff]
  %v81 = vld [vmem:[%s1 + $0x168] sm:$0xff]
  %v82 = vld [vmem:[%s1 + $0x170] sm:$0xff]
  %v83 = vld [vmem:[%s1 + $0x178] sm:$0xff]
  %v84 = vld [vmem:[%s1 + $0x180] sm:$0xff]
  %v85 = vld [vmem:[%s1 + $0x188] sm:$0xff]
  %v86 = vld [vmem:[%s1 + $0x190] sm:$0xff]
  %v87 = vld [vmem:[%s1 + $0x198] sm:$0xff]
  %v88 = vld [vmem:[%s1 + $0x1a0] sm:$0xff]
  %v89 = vld [vmem:[%s1 + $0x1a8] sm:$0xff]
  %v90 = vld [vmem:[%s1 + $0x1b0] sm:$0xff]
  %v91 = vld [vmem:[%s1 + $0x1b8] sm:$0xff]
  %v92 = vld [vmem:[%s1 + $0x1c0] sm:$0xff]
  %v93 = vld [vmem:[%s1 + $0x1c8] sm:$0xff]
  %v94 = vld [vmem:[%s1 + $0x1d0] sm:$0xff]
  %v95 = vld [vmem:[%s1 + $0x1d8] sm:$0xff]
  %v96 = vld [vmem:[%s1 + $0x1e0] sm:$0xff]
  %v97 = vld [vmem:[%s1 + $0x1e8] sm:$0xff]
  %v98 = vld [vmem:[%s1 + $0x1f0] sm:$0xff]
  %v99 = vld [vmem:[%s1 + $0x1f8] sm:$0xff]
  %v100 = vld [vmem:[%s2] sm:$0xf]
  %v102 = vlaneseq
  %v103 = vshrl.u32 %v102, 7
  %v104 = vsub.s32 0, %v103
  %v105 = vrot.slane %v100, %v104
  %v106 = vlaneseq
  %v107 = vshrl.u32 %v106, 7
  %v108 = vsub.s32 1, %v107
  %v109 = vrot.slane %v100, %v108
  %v110 = vlaneseq
  %v111 = vshrl.u32 %v110, 7
  %v112 = vsub.s32 2, %v111
  %v113 = vrot.slane %v100, %v112
  %v114 = vlaneseq
  %v115 = vshrl.u32 %v114, 7
  %v116 = vsub.s32 3, %v115
  %v117 = vrot.slane %v100, %v116
  %122 = vmatprep.subr.mxu0 %v97
  %123 = vmatpush1.msra.mxu0 %v96
  %124 = vmatprep.subr.mxu0 %v93
  %125 = vmatpush1.msra.mxu0 %v92
  %126 = vmatprep.subr.mxu0 %v89
  %127 = vmatpush1.msra.mxu0 %v88
  %128 = vmatprep.subr.mxu0 %v85
  %129 = vmatpush1.msra.mxu0 %v84
  %130 = vmatprep.subr.mxu0 %v81
  %131 = vmatpush1.msra.mxu0 %v80
  %132 = vmatprep.subr.mxu0 %v77
  %133 = vmatpush1.msra.mxu0 %v76
  %134 = vmatprep.subr.mxu0 %v73
  %135 = vmatpush1.msra.mxu0 %v72
  %136 = vmatprep.subr.mxu0 %v69
  %137 = vmatpush1.msra.mxu0 %v68
  %138 = vmatprep.subr.mxu0 %v65
  %139 = vmatpush1.msra.mxu0 %v64
  %140 = vmatprep.subr.mxu0 %v61
  %141 = vmatpush1.msra.mxu0 %v60
  %142 = vmatprep.subr.mxu0 %v57
  %143 = vmatpush1.msra.mxu0 %v56
  %144 = vmatprep.subr.mxu0 %v53
  %145 = vmatpush1.msra.mxu0 %v52
  %146 = vmatprep.subr.mxu0 %v49
  %147 = vmatpush1.msra.mxu0 %v48
  %148 = vmatprep.subr.mxu0 %v45
  %149 = vmatpush1.msra.mxu0 %v44
  %150 = vmatprep.subr.mxu0 %v41
  %151 = vmatpush1.msra.mxu0 %v40
  %152 = vmatprep.subr.mxu0 %v37
  %153 = vmatpush1.msra.mxu0 %v36
  %154 = vmatprep.subr.mxu0 0.0
  %155 = vmatpush2.msra.mxu0 0.0
  %156 = vmatprep.subr.mxu0 0.0
  %157 = vmatpush2.msra.mxu0 0.0
  %158 = vmatprep.subr.mxu0 0.0
  %159 = vmatpush2.msra.mxu0 0.0
  %160 = vmatprep.subr.mxu0 0.0
  %161 = vmatpush2.msra.mxu0 0.0
  %162 = vmatprep.subr.mxu0 0.0
  %163 = vmatpush2.msra.mxu0 0.0
  %164 = vmatprep.subr.mxu0 0.0
  %165 = vmatpush2.msra.mxu0 0.0
  %166 = vmatprep.subr.mxu0 0.0
  %167 = vmatpush2.msra.mxu0 0.0
  %168 = vmatprep.subr.mxu0 0.0
  %169 = vmatpush2.msra.mxu0 0.0
  %170 = vmatprep.subr.mxu0 0.0
  %171 = vmatpush2.msra.mxu0 0.0
  %172 = vmatprep.subr.mxu0 0.0
  %173 = vmatpush2.msra.mxu0 0.0
  %174 = vmatprep.subr.mxu0 0.0
  %175 = vmatpush2.msra.mxu0 0.0
  %176 = vmatprep.subr.mxu0 0.0
  %177 = vmatpush2.msra.mxu0 0.0
  %178 = vmatprep.subr.mxu0 0.0
  %179 = vmatpush2.msra.mxu0 0.0
  %180 = vmatprep.subr.mxu0 0.0
  %181 = vmatpush2.msra.mxu0 0.0
  %182 = vmatprep.subr.mxu0 0.0
  %183 = vmatpush2.msra.mxu0 0.0
  %184 = vmatprep.subr.mxu0 0.0
  %185 = vmatpush2.msra.mxu0 0.0
  %186 = vmatprep.mubr.f32.mxu0 0.0
  %187 = vmatmul.mubr.f32.gmra.mxu0 %v35
  %v188 = vpop.f32.mrf.mxu0
  %v189 = vadd.f32 %v105, %v188
  %v190 = vpop.f32.mrf.mxu0
  %v191 = vadd.f32 %v109, %v190
  %192 = vdwg.mxu0
  %193 = vmatprep.subr.mxu0 %v99
  %194 = vmatpush1.msra.mxu0 %v98
  %195 = vmatprep.subr.mxu0 %v95
  %196 = vmatpush1.msra.mxu0 %v94
  %197 = vmatprep.subr.mxu0 %v91
  %198 = vmatpush1.msra.mxu0 %v90
  %199 = vmatprep.subr.mxu0 %v87
  %200 = vmatpush1.msra.mxu0 %v86
  %201 = vmatprep.subr.mxu0 %v83
  %202 = vmatpush1.msra.mxu0 %v82
  %203 = vmatprep.subr.mxu0 %v79
  %204 = vmatpush1.msra.mxu0 %v78
  %205 = vmatprep.subr.mxu0 %v75
  %206 = vmatpush1.msra.mxu0 %v74
  %207 = vmatprep.subr.mxu0 %v71
  %208 = vmatpush1.msra.mxu0 %v70
  %209 = vmatprep.subr.mxu0 %v67
  %210 = vmatpush1.msra.mxu0 %v66
  %211 = vmatprep.subr.mxu0 %v63
  %212 = vmatpush1.msra.mxu0 %v62
  %213 = vmatprep.subr.mxu0 %v59
  %214 = vmatpush1.msra.mxu0 %v58
  %215 = vmatprep.subr.mxu0 %v55
  %216 = vmatpush1.msra.mxu0 %v54
  %217 = vmatprep.subr.mxu0 %v51
  %218 = vmatpush1.msra.mxu0 %v50
  %219 = vmatprep.subr.mxu0 %v47
  %220 = vmatpush1.msra.mxu0 %v46
  %221 = vmatprep.subr.mxu0 %v43
  %222 = vmatpush1.msra.mxu0 %v42
  %223 = vmatprep.subr.mxu0 %v39
  %224 = vmatpush1.msra.mxu0 %v38
  %225 = vmatprep.subr.mxu0 0.0
  %226 = vmatpush2.msra.mxu0 0.0
  %227 = vmatprep.subr.mxu0 0.0
  %228 = vmatpush2.msra.mxu0 0.0
  %229 = vmatprep.subr.mxu0 0.0
  %230 = vmatpush2.msra.mxu0 0.0
  %231 = vmatprep.subr.mxu0 0.0
  %232 = vmatpush2.msra.mxu0 0.0
  %233 = vmatprep.subr.mxu0 0.0
  %234 = vmatpush2.msra.mxu0 0.0
  %235 = vmatprep.subr.mxu0 0.0
  %236 = vmatpush2.msra.mxu0 0.0
  %237 = vmatprep.subr.mxu0 0.0
  %238 = vmatpush2.msra.mxu0 0.0
  %239 = vmatprep.subr.mxu0 0.0
  %240 = vmatpush2.msra.mxu0 0.0
  %241 = vmatprep.subr.mxu0 0.0
  %242 = vmatpush2.msra.mxu0 0.0
  %243 = vmatprep.subr.mxu0 0.0
  %244 = vmatpush2.msra.mxu0 0.0
  %245 = vmatprep.subr.mxu0 0.0
  %246 = vmatpush2.msra.mxu0 0.0
  %247 = vmatprep.subr.mxu0 0.0
  %248 = vmatpush2.msra.mxu0 0.0
  %249 = vmatprep.subr.mxu0 0.0
  %250 = vmatpush2.msra.mxu0 0.0
  %251 = vmatprep.subr.mxu0 0.0
  %252 = vmatpush2.msra.mxu0 0.0
  %253 = vmatprep.subr.mxu0 0.0
  %254 = vmatpush2.msra.mxu0 0.0
  %255 = vmatprep.subr.mxu0 0.0
  %256 = vmatpush2.msra.mxu0 0.0
  %257 = vmatprep.mubr.f32.mxu0 0.0
  %258 = vmatmul.mubr.f32.gmra.mxu0 %v35
  %v259 = vpop.f32.mrf.mxu0
  %v260 = vadd.f32 %v113, %v259
  %v261 = vpop.f32.mrf.mxu0
  %v262 = vadd.f32 %v117, %v261
  %263 = vdwg.mxu0
  %v264 = vmax.f32 %v189, 0.0
  %v265 = vmax.f32 %v191, 0.0
  %v266 = vmax.f32 %v260, 0.0
  %v267 = vmax.f32 %v262, 0.0
  %v268 = vld [vmem:[%s3] sm:$0xff]
  %v269 = vld [vmem:[%s3 + $0x8] sm:$0xff]
  %v270 = vld [vmem:[%s3 + $0x10] sm:$0xff]
  %v271 = vld [vmem:[%s3 + $0x18] sm:$0xff]
  %v272 = vld [vmem:[%s3 + $0x20] sm:$0xff]
  %v273 = vld [vmem:[%s3 + $0x28] sm:$0xff]
  %v274 = vld [vmem:[%s3 + $0x30] sm:$0xff]
  %v275 = vld [vmem:[%s3 + $0x38] sm:$0xff]
  %v276 = vld [vmem:[%s3 + $0x40] sm:$0xff]
  %v277 = vld [vmem:[%s3 + $0x48] sm:$0xff]
  %v278 = vld [vmem:[%s3 + $0x50] sm:$0xff]
  %v279 = vld [vmem:[%s3 + $0x58] sm:$0xff]
  %v280 = vld [vmem:[%s3 + $0x60] sm:$0xff]
  %v281 = vld [vmem:[%s3 + $0x68] sm:$0xff]
  %v282 = vld [vmem:[%s3 + $0x70] sm:$0xff]
  %v283 = vld [vmem:[%s3 + $0x78] sm:$0xff]
  %v284 = vld [vmem:[%s3 + $0x80] sm:$0xff]
  %v285 = vld [vmem:[%s3 + $0x88] sm:$0xff]
  %v286 = vld [vmem:[%s3 + $0x90] sm:$0xff]
  %v287 = vld [vmem:[%s3 + $0x98] sm:$0xff]
  %v288 = vld [vmem:[%s3 + $0xa0] sm:$0xff]
  %v289 = vld [vmem:[%s3 + $0xa8] sm:$0xff]
  %v290 = vld [vmem:[%s3 + $0xb0] sm:$0xff]
  %v291 = vld [vmem:[%s3 + $0xb8] sm:$0xff]
  %v292 = vld [vmem:[%s3 + $0xc0] sm:$0xff]
  %v293 = vld [vmem:[%s3 + $0xc8] sm:$0xff]
  %v294 = vld [vmem:[%s3 + $0xd0] sm:$0xff]
  %v295 = vld [vmem:[%s3 + $0xd8] sm:$0xff]
  %v296 = vld [vmem:[%s3 + $0xe0] sm:$0xff]
  %v297 = vld [vmem:[%s3 + $0xe8] sm:$0xff]
  %v298 = vld [vmem:[%s3 + $0xf0] sm:$0xff]
  %v299 = vld [vmem:[%s3 + $0xf8] sm:$0xff]
  %v300 = vld [vmem:[%s3 + $0x100] sm:$0xff]
  %v301 = vld [vmem:[%s3 + $0x108] sm:$0xff]
  %v302 = vld [vmem:[%s3 + $0x110] sm:$0xff]
  %v303 = vld [vmem:[%s3 + $0x118] sm:$0xff]
  %v304 = vld [vmem:[%s3 + $0x120] sm:$0xff]
  %v305 = vld [vmem:[%s3 + $0x128] sm:$0xff]
  %v306 = vld [vmem:[%s3 + $0x130] sm:$0xff]
  %v307 = vld [vmem:[%s3 + $0x138] sm:$0xff]
  %v308 = vld [vmem:[%s3 + $0x140] sm:$0xff]
  %v309 = vld [vmem:[%s3 + $0x148] sm:$0xff]
  %v310 = vld [vmem:[%s3 + $0x150] sm:$0xff]
  %v311 = vld [vmem:[%s3 + $0x158] sm:$0xff]
  %v312 = vld [vmem:[%s3 + $0x160] sm:$0xff]
  %v313 = vld [vmem:[%s3 + $0x168] sm:$0xff]
  %v314 = vld [vmem:[%s3 + $0x170] sm:$0xff]
  %v315 = vld [vmem:[%s3 + $0x178] sm:$0xff]
  %v316 = vld [vmem:[%s3 + $0x180] sm:$0xff]
  %v317 = vld [vmem:[%s3 + $0x188] sm:$0xff]
  %v318 = vld [vmem:[%s3 + $0x190] sm:$0xff]
  %v319 = vld [vmem:[%s3 + $0x198] sm:$0xff]
  %v320 = vld [vmem:[%s3 + $0x1a0] sm:$0xff]
  %v321 = vld [vmem:[%s3 + $0x1a8] sm:$0xff]
  %v322 = vld [vmem:[%s3 + $0x1b0] sm:$0xff]
  %v323 = vld [vmem:[%s3 + $0x1b8] sm:$0xff]
  %v324 = vld [vmem:[%s3 + $0x1c0] sm:$0xff]
  %v325 = vld [vmem:[%s3 + $0x1c8] sm:$0xff]
  %v326 = vld [vmem:[%s3 + $0x1d0] sm:$0xff]
  %v327 = vld [vmem:[%s3 + $0x1d8] sm:$0xff]
  %v328 = vld [vmem:[%s3 + $0x1e0] sm:$0xff]
  %v329 = vld [vmem:[%s3 + $0x1e8] sm:$0xff]
  %v330 = vld [vmem:[%s3 + $0x1f0] sm:$0xff]
  %v331 = vld [vmem:[%s3 + $0x1f8] sm:$0xff]
  %v332 = vld [vmem:[%s4] sm:$0x3]
  %v334 = vlaneseq
  %v335 = vshrl.u32 %v334, 7
  %v336 = vsub.s32 0, %v335
  %v337 = vrot.slane %v332, %v336
  %v338 = vlaneseq
  %v339 = vshrl.u32 %v338, 7
  %v340 = vsub.s32 1, %v339
  %v341 = vrot.slane %v332, %v340
  %344 = vmatprep.subr.mxu0 %v299
  %345 = vmatpush1.msra.mxu0 %v298
  %346 = vmatprep.subr.mxu0 %v297
  %347 = vmatpush1.msra.mxu0 %v296
  %348 = vmatprep.subr.mxu0 %v295
  %349 = vmatpush1.msra.mxu0 %v294
  %350 = vmatprep.subr.mxu0 %v293
  %351 = vmatpush1.msra.mxu0 %v292
  %352 = vmatprep.subr.mxu0 %v291
  %353 = vmatpush1.msra.mxu0 %v290
  %354 = vmatprep.subr.mxu0 %v289
  %355 = vmatpush1.msra.mxu0 %v288
  %356 = vmatprep.subr.mxu0 %v287
  %357 = vmatpush1.msra.mxu0 %v286
  %358 = vmatprep.subr.mxu0 %v285
  %359 = vmatpush1.msra.mxu0 %v284
  %360 = vmatprep.subr.mxu0 %v283
  %361 = vmatpush1.msra.mxu0 %v282
  %362 = vmatprep.subr.mxu0 %v281
  %363 = vmatpush1.msra.mxu0 %v280
  %364 = vmatprep.subr.mxu0 %v279
  %365 = vmatpush1.msra.mxu0 %v278
  %366 = vmatprep.subr.mxu0 %v277
  %367 = vmatpush1.msra.mxu0 %v276
  %368 = vmatprep.subr.mxu0 %v275
  %369 = vmatpush1.msra.mxu0 %v274
  %370 = vmatprep.subr.mxu0 %v273
  %371 = vmatpush1.msra.mxu0 %v272
  %372 = vmatprep.subr.mxu0 %v271
  %373 = vmatpush1.msra.mxu0 %v270
  %374 = vmatprep.subr.mxu0 %v269
  %375 = vmatpush1.msra.mxu0 %v268
  %376 = vmatprep.subr.mxu0 %v331
  %377 = vmatpush2.msra.mxu0 %v330
  %378 = vmatprep.subr.mxu0 %v329
  %379 = vmatpush2.msra.mxu0 %v328
  %380 = vmatprep.subr.mxu0 %v327
  %381 = vmatpush2.msra.mxu0 %v326
  %382 = vmatprep.subr.mxu0 %v325
  %383 = vmatpush2.msra.mxu0 %v324
  %384 = vmatprep.subr.mxu0 %v323
  %385 = vmatpush2.msra.mxu0 %v322
  %386 = vmatprep.subr.mxu0 %v321
  %387 = vmatpush2.msra.mxu0 %v320
  %388 = vmatprep.subr.mxu0 %v319
  %389 = vmatpush2.msra.mxu0 %v318
  %390 = vmatprep.subr.mxu0 %v317
  %391 = vmatpush2.msra.mxu0 %v316
  %392 = vmatprep.subr.mxu0 %v315
  %393 = vmatpush2.msra.mxu0 %v314
  %394 = vmatprep.subr.mxu0 %v313
  %395 = vmatpush2.msra.mxu0 %v312
  %396 = vmatprep.subr.mxu0 %v311
  %397 = vmatpush2.msra.mxu0 %v310
  %398 = vmatprep.subr.mxu0 %v309
  %399 = vmatpush2.msra.mxu0 %v308
  %400 = vmatprep.subr.mxu0 %v307
  %401 = vmatpush2.msra.mxu0 %v306
  %402 = vmatprep.subr.mxu0 %v305
  %403 = vmatpush2.msra.mxu0 %v304
  %404 = vmatprep.subr.mxu0 %v303
  %405 = vmatpush2.msra.mxu0 %v302
  %406 = vmatprep.subr.mxu0 %v301
  %407 = vmatpush2.msra.mxu0 %v300
  %408 = vmatprep.mubr.f32.mxu0 %v265
  %409 = vmatmul.mubr.f32.gmra.mxu0 %v264
  %v410 = vpop.f32.mrf.mxu0
  %v411 = vadd.f32 %v337, %v410
  %v412 = vpop.f32.mrf.mxu0
  %v413 = vadd.f32 %v341, %v412
  %414 = vdwg.mxu0
  %v415 = vmax.f32 %v411, 0.0
  %v416 = vmax.f32 %v413, 0.0
  %v417 = vld [vmem:[%s5] sm:$0xff]
  %v418 = vld [vmem:[%s5 + $0x8] sm:$0xff]
  %v419 = vld [vmem:[%s5 + $0x10] sm:$0xff]
  %v420 = vld [vmem:[%s5 + $0x18] sm:$0xff]
  %v421 = vld [vmem:[%s5 + $0x20] sm:$0xff]
  %v422 = vld [vmem:[%s5 + $0x28] sm:$0xff]
  %v423 = vld [vmem:[%s5 + $0x30] sm:$0xff]
  %v424 = vld [vmem:[%s5 + $0x38] sm:$0xff]
  %v425 = vld [vmem:[%s5 + $0x40] sm:$0xff]
  %v426 = vld [vmem:[%s5 + $0x48] sm:$0xff]
  %v427 = vld [vmem:[%s5 + $0x50] sm:$0xff]
  %v428 = vld [vmem:[%s5 + $0x58] sm:$0xff]
  %v429 = vld [vmem:[%s5 + $0x60] sm:$0xff]
  %v430 = vld [vmem:[%s5 + $0x68] sm:$0xff]
  %v431 = vld [vmem:[%s5 + $0x70] sm:$0xff]
  %v432 = vld [vmem:[%s5 + $0x78] sm:$0xff]
  %v433 = vld [vmem:[%s5 + $0x80] sm:$0xff]
  %v434 = vld [vmem:[%s5 + $0x88] sm:$0xff]
  %v435 = vld [vmem:[%s5 + $0x90] sm:$0xff]
  %v436 = vld [vmem:[%s5 + $0x98] sm:$0xff]
  %v437 = vld [vmem:[%s5 + $0xa0] sm:$0xff]
  %v438 = vld [vmem:[%s5 + $0xa8] sm:$0xff]
  %v439 = vld [vmem:[%s5 + $0xb0] sm:$0xff]
  %v440 = vld [vmem:[%s5 + $0xb8] sm:$0xff]
  %v441 = vld [vmem:[%s5 + $0xc0] sm:$0xff]
  %v442 = vld [vmem:[%s5 + $0xc8] sm:$0xff]
  %v443 = vld [vmem:[%s5 + $0xd0] sm:$0xff]
  %v444 = vld [vmem:[%s5 + $0xd8] sm:$0xff]
  %v445 = vld [vmem:[%s5 + $0xe0] sm:$0xff]
  %v446 = vld [vmem:[%s5 + $0xe8] sm:$0xff]
  %v447 = vld [vmem:[%s5 + $0xf0] sm:$0xff]
  %v448 = vld [vmem:[%s5 + $0xf8] sm:$0xff]
  %v449 = vld [vmem:[%s5 + $0x100] sm:$0xff]
  %v450 = vld [vmem:[%s5 + $0x108] sm:$0xff]
  %v451 = vld [vmem:[%s5 + $0x110] sm:$0xff]
  %v452 = vld [vmem:[%s5 + $0x118] sm:$0xff]
  %v453 = vld [vmem:[%s5 + $0x120] sm:$0xff]
  %v454 = vld [vmem:[%s5 + $0x128] sm:$0xff]
  %v455 = vld [vmem:[%s5 + $0x130] sm:$0xff]
  %v456 = vld [vmem:[%s5 + $0x138] sm:$0xff]
  %v457 = vld [vmem:[%s5 + $0x140] sm:$0xff]
  %v458 = vld [vmem:[%s5 + $0x148] sm:$0xff]
  %v459 = vld [vmem:[%s5 + $0x150] sm:$0xff]
  %v460 = vld [vmem:[%s5 + $0x158] sm:$0xff]
  %v461 = vld [vmem:[%s5 + $0x160] sm:$0xff]
  %v462 = vld [vmem:[%s5 + $0x168] sm:$0xff]
  %v463 = vld [vmem:[%s5 + $0x170] sm:$0xff]
  %v464 = vld [vmem:[%s5 + $0x178] sm:$0xff]
  %v465 = vld [vmem:[%s5 + $0x180] sm:$0xff]
  %v466 = vld [vmem:[%s5 + $0x188] sm:$0xff]
  %v467 = vld [vmem:[%s5 + $0x190] sm:$0xff]
  %v468 = vld [vmem:[%s5 + $0x198] sm:$0xff]
  %v469 = vld [vmem:[%s5 + $0x1a0] sm:$0xff]
  %v470 = vld [vmem:[%s5 + $0x1a8] sm:$0xff]
  %v471 = vld [vmem:[%s5 + $0x1b0] sm:$0xff]
  %v472 = vld [vmem:[%s5 + $0x1b8] sm:$0xff]
  %v473 = vld [vmem:[%s5 + $0x1c0] sm:$0xff]
  %v474 = vld [vmem:[%s5 + $0x1c8] sm:$0xff]
  %v475 = vld [vmem:[%s5 + $0x1d0] sm:$0xff]
  %v476 = vld [vmem:[%s5 + $0x1d8] sm:$0xff]
  %v477 = vld [vmem:[%s5 + $0x1e0] sm:$0xff]
  %v478 = vld [vmem:[%s5 + $0x1e8] sm:$0xff]
  %v479 = vld [vmem:[%s5 + $0x1f0] sm:$0xff]
  %v480 = vld [vmem:[%s5 + $0x1f8] sm:$0xff]
  %v481 = vld [vmem:[%s6] sm:$0x3]
  %v483 = vlaneseq
  %v484 = vshrl.u32 %v483, 7
  %v485 = vsub.s32 0, %v484
  %v486 = vrot.slane %v481, %v485
  %v487 = vlaneseq
  %v488 = vshrl.u32 %v487, 7
  %v489 = vsub.s32 1, %v488
  %v490 = vrot.slane %v481, %v489
  %493 = vmatprep.subr.mxu0 %v448
  %494 = vmatpush1.msra.mxu0 %v447
  %495 = vmatprep.subr.mxu0 %v446
  %496 = vmatpush1.msra.mxu0 %v445
  %497 = vmatprep.subr.mxu0 %v444
  %498 = vmatpush1.msra.mxu0 %v443
  %499 = vmatprep.subr.mxu0 %v442
  %500 = vmatpush1.msra.mxu0 %v441
  %501 = vmatprep.subr.mxu0 %v440
  %502 = vmatpush1.msra.mxu0 %v439
  %503 = vmatprep.subr.mxu0 %v438
  %504 = vmatpush1.msra.mxu0 %v437
  %505 = vmatprep.subr.mxu0 %v436
  %506 = vmatpush1.msra.mxu0 %v435
  %507 = vmatprep.subr.mxu0 %v434
  %508 = vmatpush1.msra.mxu0 %v433
  %509 = vmatprep.subr.mxu0 %v432
  %510 = vmatpush1.msra.mxu0 %v431
  %511 = vmatprep.subr.mxu0 %v430
  %512 = vmatpush1.msra.mxu0 %v429
  %513 = vmatprep.subr.mxu0 %v428
  %514 = vmatpush1.msra.mxu0 %v427
  %515 = vmatprep.subr.mxu0 %v426
  %516 = vmatpush1.msra.mxu0 %v425
  %517 = vmatprep.subr.mxu0 %v424
  %518 = vmatpush1.msra.mxu0 %v423
  %519 = vmatprep.subr.mxu0 %v422
  %520 = vmatpush1.msra.mxu0 %v421
  %521 = vmatprep.subr.mxu0 %v420
  %522 = vmatpush1.msra.mxu0 %v419
  %523 = vmatprep.subr.mxu0 %v418
  %524 = vmatpush1.msra.mxu0 %v417
  %525 = vmatprep.subr.mxu0 %v480
  %526 = vmatpush2.msra.mxu0 %v479
  %527 = vmatprep.subr.mxu0 %v478
  %528 = vmatpush2.msra.mxu0 %v477
  %529 = vmatprep.subr.mxu0 %v476
  %530 = vmatpush2.msra.mxu0 %v475
  %531 = vmatprep.subr.mxu0 %v474
  %532 = vmatpush2.msra.mxu0 %v473
  %533 = vmatprep.subr.mxu0 %v472
  %534 = vmatpush2.msra.mxu0 %v471
  %535 = vmatprep.subr.mxu0 %v470
  %536 = vmatpush2.msra.mxu0 %v469
  %537 = vmatprep.subr.mxu0 %v468
  %538 = vmatpush2.msra.mxu0 %v467
  %539 = vmatprep.subr.mxu0 %v466
  %540 = vmatpush2.msra.mxu0 %v465
  %541 = vmatprep.subr.mxu0 %v464
  %542 = vmatpush2.msra.mxu0 %v463
  %543 = vmatprep.subr.mxu0 %v462
  %544 = vmatpush2.msra.mxu0 %v461
  %545 = vmatprep.subr.mxu0 %v460
  %546 = vmatpush2.msra.mxu0 %v459
  %547 = vmatprep.subr.mxu0 %v458
  %548 = vmatpush2.msra.mxu0 %v457
  %549 = vmatprep.subr.mxu0 %v456
  %550 = vmatpush2.msra.mxu0 %v455
  %551 = vmatprep.subr.mxu0 %v454
  %552 = vmatpush2.msra.mxu0 %v453
  %553 = vmatprep.subr.mxu0 %v452
  %554 = vmatpush2.msra.mxu0 %v451
  %555 = vmatprep.subr.mxu0 %v450
  %556 = vmatpush2.msra.mxu0 %v449
  %557 = vmatprep.mubr.f32.mxu0 %v267
  %558 = vmatmul.mubr.f32.gmra.mxu0 %v266
  %v559 = vpop.f32.mrf.mxu0
  %v560 = vadd.f32 %v486, %v559
  %v561 = vpop.f32.mrf.mxu0
  %v562 = vadd.f32 %v490, %v561
  %563 = vdwg.mxu0
  %v564 = vmax.f32 %v560, 0.0
  %v565 = vmax.f32 %v562, 0.0
  %v566 = vld [vmem:[%s7] sm:$0xff]
  %v567 = vld [vmem:[%s7 + $0x8] sm:$0xff]
  %v568 = vld [vmem:[%s7 + $0x10] sm:$0xff]
  %v569 = vld [vmem:[%s7 + $0x18] sm:$0xff]
  %v570 = vld [vmem:[%s7 + $0x20] sm:$0xff]
  %v571 = vld [vmem:[%s7 + $0x28] sm:$0xff]
  %v572 = vld [vmem:[%s7 + $0x30] sm:$0xff]
  %v573 = vld [vmem:[%s7 + $0x38] sm:$0xff]
  %v574 = vld [vmem:[%s7 + $0x40] sm:$0xff]
  %v575 = vld [vmem:[%s7 + $0x48] sm:$0xff]
  %v576 = vld [vmem:[%s7 + $0x50] sm:$0xff]
  %v577 = vld [vmem:[%s7 + $0x58] sm:$0xff]
  %v578 = vld [vmem:[%s7 + $0x60] sm:$0xff]
  %v579 = vld [vmem:[%s7 + $0x68] sm:$0xff]
  %v580 = vld [vmem:[%s7 + $0x70] sm:$0xff]
  %v581 = vld [vmem:[%s7 + $0x78] sm:$0xff]
  %v582 = vld [vmem:[%s7 + $0x80] sm:$0xff]
  %v583 = vld [vmem:[%s7 + $0x88] sm:$0xff]
  %v584 = vld [vmem:[%s7 + $0x90] sm:$0xff]
  %v585 = vld [vmem:[%s7 + $0x98] sm:$0xff]
  %v586 = vld [vmem:[%s7 + $0xa0] sm:$0xff]
  %v587 = vld [vmem:[%s7 + $0xa8] sm:$0xff]
  %v588 = vld [vmem:[%s7 + $0xb0] sm:$0xff]
  %v589 = vld [vmem:[%s7 + $0xb8] sm:$0xff]
  %v590 = vld [vmem:[%s7 + $0xc0] sm:$0xff]
  %v591 = vld [vmem:[%s7 + $0xc8] sm:$0xff]
  %v592 = vld [vmem:[%s7 + $0xd0] sm:$0xff]
  %v593 = vld [vmem:[%s7 + $0xd8] sm:$0xff]
  %v594 = vld [vmem:[%s7 + $0xe0] sm:$0xff]
  %v595 = vld [vmem:[%s7 + $0xe8] sm:$0xff]
  %v596 = vld [vmem:[%s7 + $0xf0] sm:$0xff]
  %v597 = vld [vmem:[%s7 + $0xf8] sm:$0xff]
  %v598 = vld [vmem:[%s8] sm:$0xff]
  %v599 = vld [vmem:[%s8 + $0x8] sm:$0xff]
  %v600 = vld [vmem:[%s8 + $0x10] sm:$0xff]
  %v601 = vld [vmem:[%s8 + $0x18] sm:$0xff]
  %v602 = vld [vmem:[%s8 + $0x20] sm:$0xff]
  %v603 = vld [vmem:[%s8 + $0x28] sm:$0xff]
  %v604 = vld [vmem:[%s8 + $0x30] sm:$0xff]
  %v605 = vld [vmem:[%s8 + $0x38] sm:$0xff]
  %v606 = vld [vmem:[%s8 + $0x40] sm:$0xff]
  %v607 = vld [vmem:[%s8 + $0x48] sm:$0xff]
  %v608 = vld [vmem:[%s8 + $0x50] sm:$0xff]
  %v609 = vld [vmem:[%s8 + $0x58] sm:$0xff]
  %v610 = vld [vmem:[%s8 + $0x60] sm:$0xff]
  %v611 = vld [vmem:[%s8 + $0x68] sm:$0xff]
  %v612 = vld [vmem:[%s8 + $0x70] sm:$0xff]
  %v613 = vld [vmem:[%s8 + $0x78] sm:$0xff]
  %v614 = vld [vmem:[%s8 + $0x80] sm:$0xff]
  %v615 = vld [vmem:[%s8 + $0x88] sm:$0xff]
  %v616 = vld [vmem:[%s8 + $0x90] sm:$0xff]
  %v617 = vld [vmem:[%s8 + $0x98] sm:$0xff]
  %v618 = vld [vmem:[%s8 + $0xa0] sm:$0xff]
  %v619 = vld [vmem:[%s8 + $0xa8] sm:$0xff]
  %v620 = vld [vmem:[%s8 + $0xb0] sm:$0xff]
  %v621 = vld [vmem:[%s8 + $0xb8] sm:$0xff]
  %v622 = vld [vmem:[%s8 + $0xc0] sm:$0xff]
  %v623 = vld [vmem:[%s8 + $0xc8] sm:$0xff]
  %v624 = vld [vmem:[%s8 + $0xd0] sm:$0xff]
  %v625 = vld [vmem:[%s8 + $0xd8] sm:$0xff]
  %v626 = vld [vmem:[%s8 + $0xe0] sm:$0xff]
  %v627 = vld [vmem:[%s8 + $0xe8] sm:$0xff]
  %v628 = vld [vmem:[%s8 + $0xf0] sm:$0xff]
  %v629 = vld [vmem:[%s8 + $0xf8] sm:$0xff]
  %630 = vmatprep.subr.mxu0 0.0
  %631 = vmatpush1.msra.mxu0 %v613
  %632 = vmatprep.subr.mxu0 0.0
  %633 = vmatpush1.msra.mxu0 %v612
  %634 = vmatprep.subr.mxu0 0.0
  %635 = vmatpush1.msra.mxu0 %v611
  %636 = vmatprep.subr.mxu0 0.0
  %637 = vmatpush1.msra.mxu0 %v610
  %638 = vmatprep.subr.mxu0 0.0
  %639 = vmatpush1.msra.mxu0 %v609
  %640 = vmatprep.subr.mxu0 0.0
  %641 = vmatpush1.msra.mxu0 %v608
  %642 = vmatprep.subr.mxu0 0.0
  %643 = vmatpush1.msra.mxu0 %v607
  %644 = vmatprep.subr.mxu0 0.0
  %645 = vmatpush1.msra.mxu0 %v606
  %646 = vmatprep.subr.mxu0 0.0
  %647 = vmatpush1.msra.mxu0 %v605
  %648 = vmatprep.subr.mxu0 0.0
  %649 = vmatpush1.msra.mxu0 %v604
  %650 = vmatprep.subr.mxu0 0.0
  %651 = vmatpush1.msra.mxu0 %v603
  %652 = vmatprep.subr.mxu0 0.0
  %653 = vmatpush1.msra.mxu0 %v602
  %654 = vmatprep.subr.mxu0 0.0
  %655 = vmatpush1.msra.mxu0 %v601
  %656 = vmatprep.subr.mxu0 0.0
  %657 = vmatpush1.msra.mxu0 %v600
  %658 = vmatprep.subr.mxu0 0.0
  %659 = vmatpush1.msra.mxu0 %v599
  %660 = vmatprep.subr.mxu0 0.0
  %661 = vmatpush1.msra.mxu0 %v598
  %662 = vmatprep.subr.mxu0 0.0
  %663 = vmatpush2.msra.mxu0 %v629
  %664 = vmatprep.subr.mxu0 0.0
  %665 = vmatpush2.msra.mxu0 %v628
  %666 = vmatprep.subr.mxu0 0.0
  %667 = vmatpush2.msra.mxu0 %v627
  %668 = vmatprep.subr.mxu0 0.0
  %669 = vmatpush2.msra.mxu0 %v626
  %670 = vmatprep.subr.mxu0 0.0
  %671 = vmatpush2.msra.mxu0 %v625
  %672 = vmatprep.subr.mxu0 0.0
  %673 = vmatpush2.msra.mxu0 %v624
  %674 = vmatprep.subr.mxu0 0.0
  %675 = vmatpush2.msra.mxu0 %v623
  %676 = vmatprep.subr.mxu0 0.0
  %677 = vmatpush2.msra.mxu0 %v622
  %678 = vmatprep.subr.mxu0 0.0
  %679 = vmatpush2.msra.mxu0 %v621
  %680 = vmatprep.subr.mxu0 0.0
  %681 = vmatpush2.msra.mxu0 %v620
  %682 = vmatprep.subr.mxu0 0.0
  %683 = vmatpush2.msra.mxu0 %v619
  %684 = vmatprep.subr.mxu0 0.0
  %685 = vmatpush2.msra.mxu0 %v618
  %686 = vmatprep.subr.mxu0 0.0
  %687 = vmatpush2.msra.mxu0 %v617
  %688 = vmatprep.subr.mxu0 0.0
  %689 = vmatpush2.msra.mxu0 %v616
  %690 = vmatprep.subr.mxu0 0.0
  %691 = vmatpush2.msra.mxu0 %v615
  %692 = vmatprep.subr.mxu0 0.0
  %693 = vmatpush2.msra.mxu0 %v614
  %694 = vmatprep.mubr.f32.mxu0 %v565
  %695 = vmatmul.mubr.f32.gmra.mxu0 %v564
  %v696 = vpop.f32.mrf.mxu0
  %v697 = vadd.f32 0.0, %v696
  %v698 = vpop.f32.mrf.mxu0
  %699 = vdwg.mxu0
  %700 = vmatprep.subr.mxu0 0.0
  %701 = vmatpush1.msra.mxu0 %v581
  %702 = vmatprep.subr.mxu0 0.0
  %703 = vmatpush1.msra.mxu0 %v580
  %704 = vmatprep.subr.mxu0 0.0
  %705 = vmatpush1.msra.mxu0 %v579
  %706 = vmatprep.subr.mxu0 0.0
  %707 = vmatpush1.msra.mxu0 %v578
  %708 = vmatprep.subr.mxu0 0.0
  %709 = vmatpush1.msra.mxu0 %v577
  %710 = vmatprep.subr.mxu0 0.0
  %711 = vmatpush1.msra.mxu0 %v576
  %712 = vmatprep.subr.mxu0 0.0
  %713 = vmatpush1.msra.mxu0 %v575
  %714 = vmatprep.subr.mxu0 0.0
  %715 = vmatpush1.msra.mxu0 %v574
  %716 = vmatprep.subr.mxu0 0.0
  %717 = vmatpush1.msra.mxu0 %v573
  %718 = vmatprep.subr.mxu0 0.0
  %719 = vmatpush1.msra.mxu0 %v572
  %720 = vmatprep.subr.mxu0 0.0
  %721 = vmatpush1.msra.mxu0 %v571
  %722 = vmatprep.subr.mxu0 0.0
  %723 = vmatpush1.msra.mxu0 %v570
  %724 = vmatprep.subr.mxu0 0.0
  %725 = vmatpush1.msra.mxu0 %v569
  %726 = vmatprep.subr.mxu0 0.0
  %727 = vmatpush1.msra.mxu0 %v568
  %728 = vmatprep.subr.mxu0 0.0
  %729 = vmatpush1.msra.mxu0 %v567
  %730 = vmatprep.subr.mxu0 0.0
  %731 = vmatpush1.msra.mxu0 %v566
  %732 = vmatprep.subr.mxu0 0.0
  %733 = vmatpush2.msra.mxu0 %v597
  %734 = vmatprep.subr.mxu0 0.0
  %735 = vmatpush2.msra.mxu0 %v596
  %736 = vmatprep.subr.mxu0 0.0
  %737 = vmatpush2.msra.mxu0 %v595
  %738 = vmatprep.subr.mxu0 0.0
  %739 = vmatpush2.msra.mxu0 %v594
  %740 = vmatprep.subr.mxu0 0.0
  %741 = vmatpush2.msra.mxu0 %v593
  %742 = vmatprep.subr.mxu0 0.0
  %743 = vmatpush2.msra.mxu0 %v592
  %744 = vmatprep.subr.mxu0 0.0
  %745 = vmatpush2.msra.mxu0 %v591
  %746 = vmatprep.subr.mxu0 0.0
  %747 = vmatpush2.msra.mxu0 %v590
  %748 = vmatprep.subr.mxu0 0.0
  %749 = vmatpush2.msra.mxu0 %v589
  %750 = vmatprep.subr.mxu0 0.0
  %751 = vmatpush2.msra.mxu0 %v588
  %752 = vmatprep.subr.mxu0 0.0
  %753 = vmatpush2.msra.mxu0 %v587
  %754 = vmatprep.subr.mxu0 0.0
  %755 = vmatpush2.msra.mxu0 %v586
  %756 = vmatprep.subr.mxu0 0.0
  %757 = vmatpush2.msra.mxu0 %v585
  %758 = vmatprep.subr.mxu0 0.0
  %759 = vmatpush2.msra.mxu0 %v584
  %760 = vmatprep.subr.mxu0 0.0
  %761 = vmatpush2.msra.mxu0 %v583
  %762 = vmatprep.subr.mxu0 0.0
  %763 = vmatpush2.msra.mxu0 %v582
  %764 = vmatprep.mubr.f32.mxu0 %v416
  %765 = vmatmul.mubr.f32.gmra.mxu0 %v415
  %v766 = vpop.f32.mrf.mxu0
  %v767 = vadd.f32 %v697, %v766
  %v768 = vpop.f32.mrf.mxu0
  %769 = vdwg.mxu0
  %v770 = vld [vmem:[%s9] sm:$0x1]
  %v772 = vlaneseq
  %v773 = vshrl.u32 %v772, 7
  %v774 = vsub.s32 0, %v773
  %v775 = vrot.slane %v770, %v774
  %v777 = vadd.f32 %v767, %v775
  %778 = vst [vmem:[%s10] sm:$0xff] %v777
  // Predicated region
  $region42: #{critic_forward.1} parent=0 // pred_check
    _
  $region43: #{critic_forward.1} parent=0 // pred_check_branch
    %780 = sbr.rel (0) target = $region45
  $region44: #{critic_forward.1} parent=0 // pred_region
    _
  $region45: #{critic_forward.1} parent=0 // pred_fallthru
    _
  // Predicated region
  $region46: #{critic_forward.1} parent=0 // pred_check
    _
  $region47: #{critic_forward.1} parent=0 // pred_check_branch
    %782 = sbr.rel (0) target = $region49
  $region48: #{critic_forward.1} parent=0 // pred_region
    _
  $region49: #{critic_forward.1} parent=0 // pred_fallthru
    _

</llo_original>
